<compile_context>
chip_gen: v7x
topology: tpu7x:2x2x1
jax: 0.10.0
libtpu: 0.0.40
codegen_flags: <defaults>
</compile_context>

<pallas_src>
import functools

import jax
import jax.numpy as jnp
from jax import lax
from jax.experimental import pallas as pl
from jax.experimental.pallas import tpu as pltpu


# ---------------------------------------------------------------------------
# Hardware-aware sizing helpers
# ---------------------------------------------------------------------------
def _device_vmem_limit():
    """Generation-aware scoped-VMEM budget in bytes."""
    kind = ""
    try:
        kind = (jax.devices()[0].device_kind or "").lower()
    except Exception:
        pass
    if "v7" in kind:
        return 48 * 1024 * 1024          # 64 MiB physical per TensorCore
    if "v2" in kind or "v3" in kind:
        return 16 * 1024 * 1024
    if "v4" in kind or "v5" in kind or "v6" in kind:
        return 64 * 1024 * 1024          # 128 MiB physical
    return 32 * 1024 * 1024              # unknown backend: safe default


def _choose_row_tile(mp, dp, itemsize, tile_bytes):
    """Largest row tile <= tile_bytes that is a multiple of the dtype's native
    sublane tile; prefer a tile that divides mp (no masking, unmasked vst)."""
    sub = max(8, 32 // max(1, itemsize))          # 8 f32, 16 bf16, 32 int8/fp8
    target = max(sub, tile_bytes // max(1, dp * itemsize))
    target = (target // sub) * sub
    if target >= mp:
        return mp                                  # single block == full dim
    for tm in range(target, sub - 1, -sub):        # nearest divisor at/below
        if mp % tm == 0:
            return tm
    return target


# ---------------------------------------------------------------------------
# Kernel 1: streaming per-lane (pre-shifted) sum / sum-of-squares.
# Grid = (cores, row tiles); each core owns one (acc_rows, Dp) accumulator slab
# resident in VMEM across the "arbitrary" inner axis. x is read exactly once.
# ---------------------------------------------------------------------------
def _bn_stats_kernel(x_ref, shift_ref, sum_ref, sumsq_ref, *,
                     tm, mp, nt, tiles_per_core, acc_rows,
                     need_row_mask, need_tile_gate):
    c = pl.program_id(0)
    i = pl.program_id(1)
    t = c * tiles_per_core + i                     # global row-tile index

    @pl.when(i == 0)
    def _init():
        sum_ref[...] = jnp.zeros_like(sum_ref)
        sumsq_ref[...] = jnp.zeros_like(sumsq_ref)

    def _accumulate(mask_rows):
        xs = x_ref[...].astype(jnp.float32) - shift_ref[...]
        if mask_rows:                              # only on the last partial tile
            row = t * tm + lax.broadcasted_iota(jnp.int32, xs.shape, 0)
            xs = jnp.where(row < mp, xs, 0.0)
        if acc_rows == 8:
            # (tm//8, 8, dp) partial-sum: pure vreg adds, no per-tile XLU reduce
            xg = xs.reshape(tm // 8, 8, xs.shape[-1])
            sum_ref[...] += jnp.sum(xg, axis=0)
            sumsq_ref[...] += jnp.sum(xg * xg, axis=0)
        else:
            sum_ref[...] += jnp.sum(xs, axis=0, keepdims=True)
            sumsq_ref[...] += jnp.sum(xs * xs, axis=0, keepdims=True)

    if need_row_mask:
        @pl.when(t == nt - 1)                      # masked path: last tile only
        def _last():
            _accumulate(True)

        @pl.when(t < nt - 1)                       # dense steady-state path
        def _dense():
            _accumulate(False)
    elif need_tile_gate:
        @pl.when(t < nt)                           # skip core-split padding tiles
        def _gated():
            _accumulate(False)
    else:
        _accumulate(False)


# ---------------------------------------------------------------------------
# Kernel 2: normalize pass — a pure fused multiply-add per row tile.
# scale/shift are tiny (1, Dp) inputs computed once (exp/rsqrt hoisted out).
# Row axis is "parallel" so megacore chips shard it across TensorCores.
# ---------------------------------------------------------------------------
def _bn_norm_kernel(x_ref, scale_ref, shift_ref, y_ref):
    x = x_ref[...].astype(jnp.float32)
    y_ref[...] = (x * scale_ref[...] + shift_ref[...]).astype(y_ref.dtype)


# ---------------------------------------------------------------------------
# Kernel 3: fused single-pass training kernel for VMEM-resident x.
# One HBM read of x + one write of y; exact two-pass mean/var; the O(Dp)
# exp/rsqrt finalize runs once inside the kernel.
# ---------------------------------------------------------------------------
def _bn_fused_train_kernel(x_ref, lg_ref, bt_ref, y_ref, mean_ref, var_ref,
                           *, m, lp, d, eps):
    dp = d * lp
    x = x_ref[...].astype(jnp.float32)

    if lp > 1:
        # Fold the lp lane groups to per-feature totals (replicated back over
        # the groups) with one tiny aligned (8,dp)x(dp,dp) MXU matmul.
        jj = lax.broadcasted_iota(jnp.int32, (dp, dp), 0)
        kk = lax.broadcasted_iota(jnp.int32, (dp, dp), 1)
        fold = (jj % d == kk % d).astype(jnp.float32)

        def _fold_groups(v):                       # v: (1, dp)
            v8 = jnp.broadcast_to(v, (8, dp))
            return jnp.dot(v8, fold, preferred_element_type=jnp.float32)[0:1]
    else:
        def _fold_groups(v):
            return v

    mean = _fold_groups(jnp.sum(x, axis=0, keepdims=True)) * (1.0 / m)
    xc = x - mean                                   # exact two-pass variance
    denom = float(m - 1) if m > 1 else 1.0          # torch.var(0) is unbiased
    var = _fold_groups(jnp.sum(xc * xc, axis=0, keepdims=True)) * (1.0 / denom)

    inv_std = lax.rsqrt(var + eps)
    scale = jnp.exp(lg_ref[...]) * inv_std
    shift = bt_ref[...] - mean * scale
    y_ref[...] = (x * scale + shift).astype(y_ref.dtype)
    mean_ref[...] = mean
    var_ref[...] = var


# ---------------------------------------------------------------------------
# Wrapper (mirrors BatchNorm.forward of the PyTorch module)
# ---------------------------------------------------------------------------
@functools.partial(jax.jit,
                   static_argnames=("momentum", "eps", "training", "row_tile",
                                    "force_two_pass", "donate_x"))
def batchnorm_forward(x, log_gamma, beta, running_mean, running_var,
                      momentum=0.9, eps=1e-5, training=True,
                      row_tile=None, force_two_pass=False, donate_x=False):
    """Returns (y, log_abs_det_jacobian_per_feature, new_running_mean,
    new_running_var).  The log-det-Jacobian is per-feature (shape (D,));
    PyTorch's `.expand_as(x)` is a pure broadcast view, so callers can
    `jnp.broadcast_to(ldj, x.shape)` lazily.  `row_tile` (multiple of 8) and
    `force_two_pass` are testing/tuning hooks; `donate_x=True` aliases x's
    buffer to y in the normalize pass."""
    orig_shape = x.shape
    d = orig_shape[-1]
    m = 1
    for s in orig_shape[:-1]:
        m *= s

    # ---- lane packing: fold LP consecutive rows into one 128-wide lane group.
    lp = 1
    if d < 128 and 128 % d == 0 and m % (128 // d) == 0:
        lp = 128 // d
    dp, mp = d * lp, m // lp
    x2 = x.reshape(mp, dp)                         # free reshape (row-major)

    itemsize = jnp.dtype(x.dtype).itemsize
    vmem_limit = _device_vmem_limit()
    tile_bytes = min(4 * 1024 * 1024, vmem_limit // 12)
    tm = row_tile if row_tile is not None else _choose_row_tile(
        mp, dp, itemsize, tile_bytes)
    tm = min(tm, mp)

    lg = log_gamma.astype(jnp.float32)
    bt = beta.astype(jnp.float32)

    # ---- fused single-pass path (training, x fits in VMEM with headroom) ----
    fused_bytes = (mp * dp) * (4 * itemsize + 12)  # dbl-buffered in/out + f32 tmps
    use_fused = training and (not force_two_pass) and fused_bytes <= vmem_limit

    if use_fused:
        lg_p = jnp.tile(lg, lp).reshape(1, dp)
        bt_p = jnp.tile(bt, lp).reshape(1, dp)
        y2, mean_p, var_p = pl.pallas_call(
            functools.partial(_bn_fused_train_kernel, m=m, lp=lp, d=d, eps=eps),
            grid=(1,),
            in_specs=[pl.BlockSpec((mp, dp), lambda i: (0, 0)),
                      pl.BlockSpec((1, dp), lambda i: (0, 0)),
                      pl.BlockSpec((1, dp), lambda i: (0, 0))],
            out_specs=(pl.BlockSpec((mp, dp), lambda i: (0, 0)),
                       pl.BlockSpec((1, dp), lambda i: (0, 0)),
                       pl.BlockSpec((1, dp), lambda i: (0, 0))),
            out_shape=(jax.ShapeDtypeStruct((mp, dp), x.dtype),
                       jax.ShapeDtypeStruct((1, dp), jnp.float32),
                       jax.ShapeDtypeStruct((1, dp), jnp.float32)),
            compiler_params=pltpu.CompilerParams(
                dimension_semantics=("arbitrary",),
                vmem_limit_bytes=vmem_limit),
        )(x2, lg_p, bt_p)
        mean = mean_p[0, :d]                       # stats replicated per group
        var = var_p[0, :d]
        new_running_mean = running_mean * momentum + mean * (1.0 - momentum)
        new_running_var = running_var * momentum + var * (1.0 - momentum)
        ldj = lg - 0.5 * jnp.log(var + eps)
        return y2.reshape(orig_shape), ldj, new_running_mean, new_running_var

    # ---- streaming two-pass path ----
    if training:
        nt = pl.cdiv(mp, tm)
        ncores = 2 if nt >= 2 else 1               # shard stats over 2 TCs (v7x)
        tiles_per_core = pl.cdiv(nt, ncores)
        need_tile_gate = ncores * tiles_per_core > nt
        need_row_mask = (mp % tm) != 0
        acc_rows = 8 if tm % 8 == 0 else 1

        # Cheap per-feature pre-shift (mean of the first few rows): kills the
        # catastrophic cancellation of the one-pass sum/sumsq variance.
        head = min(m, 64)
        shift_f = x.reshape(m, d)[:head].astype(jnp.float32).mean(0)
        shift_p = jnp.tile(shift_f, lp).reshape(1, dp)

        def x_index_map(c, i):
            t = c * tiles_per_core + i
            if need_tile_gate:                     # clamp core-split padding tiles
                t = jnp.minimum(t, nt - 1)
            return (t, 0)

        sum_p, sumsq_p = pl.pallas_call(
            functools.partial(_bn_stats_kernel, tm=tm, mp=mp, nt=nt,
                              tiles_per_core=tiles_per_core, acc_rows=acc_rows,
                              need_row_mask=need_row_mask,
                              need_tile_gate=need_tile_gate),
            grid=(ncores, tiles_per_core),
            in_specs=[pl.BlockSpec((tm, dp), x_index_map),
                      pl.BlockSpec((1, dp), lambda c, i: (0, 0))],
            out_specs=(pl.BlockSpec((acc_rows, dp), lambda c, i: (c, 0)),
                       pl.BlockSpec((acc_rows, dp), lambda c, i: (c, 0))),
            out_shape=(jax.ShapeDtypeStruct((ncores * acc_rows, dp), jnp.float32),
                       jax.ShapeDtypeStruct((ncores * acc_rows, dp), jnp.float32)),
            compiler_params=pltpu.CompilerParams(
                dimension_semantics=("parallel", "arbitrary"),
                vmem_limit_bytes=vmem_limit),
        )(x2, shift_p)

        # fold per-core slabs, sublane rows and lane groups (O(D) work, once)
        sum_f = sum_p.reshape(-1, lp, d).sum(axis=(0, 1))
        sumsq_f = sumsq_p.reshape(-1, lp, d).sum(axis=(0, 1))
        delta = sum_f / m
        mean = shift_f + delta
        denom = (m - 1) if m > 1 else 1            # torch.var(0) is unbiased
        var = jnp.maximum((sumsq_f - m * delta * delta) / denom, 0.0)
        new_running_mean = running_mean * momentum + mean * (1.0 - momentum)
        new_running_var = running_var * momentum + var * (1.0 - momentum)
    else:
        mean = running_mean.astype(jnp.float32)
        var = running_var.astype(jnp.float32)
        new_running_mean = running_mean
        new_running_var = running_var

    # ---- per-feature finalize: done once here, NOT per grid tile.
    inv_std = 1.0 / jnp.sqrt(var + eps)
    scale = jnp.exp(lg) * inv_std                  # gamma / sqrt(var + eps)
    shift = bt - mean * scale
    ldj = lg - 0.5 * jnp.log(var + eps)            # per-feature log|det J|

    scale_p = jnp.tile(scale, lp).reshape(1, dp)
    shift_p2 = jnp.tile(shift, lp).reshape(1, dp)

    y2 = pl.pallas_call(
        _bn_norm_kernel,
        grid=(pl.cdiv(mp, tm),),
        in_specs=[pl.BlockSpec((tm, dp), lambda i: (i, 0)),
                  pl.BlockSpec((1, dp), lambda i: (0, 0)),
                  pl.BlockSpec((1, dp), lambda i: (0, 0))],
        out_specs=pl.BlockSpec((tm, dp), lambda i: (i, 0)),
        out_shape=jax.ShapeDtypeStruct((mp, dp), x.dtype),
        input_output_aliases={0: 0} if donate_x else {},
        compiler_params=pltpu.CompilerParams(
            dimension_semantics=("parallel",),
            vmem_limit_bytes=vmem_limit),
    )(x2, scale_p, shift_p2)

    return y2.reshape(orig_shape), ldj, new_running_mean, new_running_var


# ---------------------------------------------------------------------------
# Pure-JAX reference (for correctness check)
# ---------------------------------------------------------------------------
def batchnorm_ref(x, log_gamma, beta, momentum, eps, running_mean, running_var):
    d = x.shape[-1]
    xf = x.reshape(-1, d)
    mean = xf.mean(0)
    var = xf.var(0, ddof=1)
    new_rm = running_mean * momentum + mean * (1 - momentum)
    new_rv = running_var * momentum + var * (1 - momentum)
    y = jnp.exp(log_gamma) * (x - mean) / jnp.sqrt(var + eps) + beta
    ldj = jnp.broadcast_to(log_gamma - 0.5 * jnp.log(var + eps), x.shape)
    return y, ldj, new_rm, new_rv


if __name__ == "__main__":
    # shapes implied by the module: x = (batch, seq, input_size), D = input_size
    B, T, D = 2, 8, 32
    key = jax.random.PRNGKey(0)
    x = jax.random.normal(key, (B, T, D), dtype=jnp.float32)

    log_gamma = jnp.zeros((D,), jnp.float32)
    beta = jnp.zeros((D,), jnp.float32)
    running_mean = jnp.zeros((D,), jnp.float32)
    running_var = jnp.ones((D,), jnp.float32)
    momentum, eps = 0.9, 1e-5

    # -------- training mode: fused single-pass path (lane-packed (4,128), lp=4)
    y, ldj, rm, rv = batchnorm_forward(
        x, log_gamma, beta, running_mean, running_var,
        momentum=momentum, eps=eps, training=True)
    jax.block_until_ready((y, ldj, rm, rv))
    y_r, ldj_r, rm_r, rv_r = batchnorm_ref(
        x, log_gamma, beta, momentum, eps, running_mean, running_var)
    assert y.shape == x.shape and y.dtype == x.dtype
    assert jnp.allclose(y, y_r, atol=1e-5, rtol=1e-5)
    assert jnp.allclose(jnp.broadcast_to(ldj, x.shape), ldj_r, atol=1e-5, rtol=1e-5)
    assert jnp.allclose(rm, rm_r, atol=1e-5, rtol=1e-5)
    assert jnp.allclose(rv, rv_r, atol=1e-5, rtol=1e-5)

    # -------- eval mode (running stats; pure 'parallel' FMA kernel)
    y_e, ldj_e, _, _ = batchnorm_forward(
        x, log_gamma, beta, rm, rv, momentum=momentum, eps=eps, training=False)
    jax.block_until_ready((y_e, ldj_e))
    y_er = jnp.exp(log_gamma) * (x - rm) / jnp.sqrt(rv + eps) + beta
    ldj_er = log_gamma - 0.5 * jnp.log(rv + eps)
    assert jnp.allclose(y_e, y_er, atol=1e-5, rtol=1e-5)
    assert jnp.allclose(ldj_e, ldj_er, atol=1e-5, rtol=1e-5)

    # -------- streaming two-pass path, D >= 128 (no packing), partial last tile,
    # odd tile count (exercises 2-core split clamp + pl.when mask gating)
    D2, M2 = 256, 40
    xb = jax.random.normal(jax.random.PRNGKey(0), (M2, D2), dtype=jnp.float32)
    lgb = 0.1 * jnp.ones((D2,), jnp.float32)
    btb = 0.5 * jnp.ones((D2,), jnp.float32)
    rmb = jnp.zeros((D2,), jnp.float32)
    rvb = jnp.ones((D2,), jnp.float32)
    yb, ldjb, rmb_n, rvb_n = batchnorm_forward(
        xb, lgb, btb, rmb, rvb, momentum=momentum, eps=eps,
        training=True, row_tile=16, force_two_pass=True)
    jax.block_until_ready((yb, ldjb, rmb_n, rvb_n))
    yb_r, ldjb_r, rmb_r, rvb_r = batchnorm_ref(xb, lgb, btb, momentum, eps, rmb, rvb)
    assert jnp.allclose(yb, yb_r, atol=1e-5, rtol=1e-5)
    assert jnp.allclose(jnp.broadcast_to(ldjb, xb.shape), ldjb_r, atol=1e-5, rtol=1e-5)
    assert jnp.allclose(rmb_n, rmb_r, atol=1e-5, rtol=1e-5)
    assert jnp.allclose(rvb_n, rvb_r, atol=1e-5, rtol=1e-5)

    # -------- streaming path, evenly-divisible tiles + nonzero mean
    # (dense unmasked fast path, pre-shifted accumulation)
    M3 = 64
    xc = jax.random.normal(jax.random.PRNGKey(0), (M3, D2), dtype=jnp.float32) * 2.0 + 3.0
    yc, ldjc, rmc_n, rvc_n = batchnorm_forward(
        xc, lgb, btb, rmb, rvb, momentum=momentum, eps=eps,
        training=True, row_tile=16, force_two_pass=True)
    jax.block_until_ready((yc, ldjc, rmc_n, rvc_n))
    yc_r, ldjc_r, rmc_r, rvc_r = batchnorm_ref(xc, lgb, btb, momentum, eps, rmb, rvb)
    assert jnp.allclose(yc, yc_r, atol=1e-5, rtol=1e-5)
    assert jnp.allclose(rmc_n, rmc_r, atol=1e-5, rtol=1e-5)
    assert jnp.allclose(rvc_n, rvc_r, atol=1e-5, rtol=1e-5)

    print("KERNEL_OK")
</pallas_src>

<mosaic_0001>
module attributes {stable_mosaic.version = 11 : i64} {
  func.func @_bn_fused_train_kernel(%arg0: i32, %arg1: memref<4x128xf32, #tpu.memory_space<vmem>>, %arg2: memref<1x128xf32, #tpu.memory_space<vmem>>, %arg3: memref<1x128xf32, #tpu.memory_space<vmem>>, %arg4: memref<4x128xf32, #tpu.memory_space<vmem>>, %arg5: memref<1x128xf32, #tpu.memory_space<vmem>>, %arg6: memref<1x128xf32, #tpu.memory_space<vmem>>) attributes {dimension_semantics = [#tpu.dimension_semantics<arbitrary>], iteration_bounds = array<i64: 1>, scalar_prefetch = 0 : i64, scratch_operands = 0 : i64, tpu.core_type = #tpu.core_type<tc>, window_params = [{pipeline_mode = #tpu.pipeline_mode<synchronous>, transform_indices = @transform_0, window_bounds = array<i64: 4, 128>}, {pipeline_mode = #tpu.pipeline_mode<synchronous>, transform_indices = @transform_1, window_bounds = array<i64: 1, 128>}, {pipeline_mode = #tpu.pipeline_mode<synchronous>, transform_indices = @transform_2, window_bounds = array<i64: 1, 128>}, {pipeline_mode = #tpu.pipeline_mode<synchronous>, transform_indices = @transform_3, window_bounds = array<i64: 4, 128>}, {pipeline_mode = #tpu.pipeline_mode<synchronous>, transform_indices = @transform_4, window_bounds = array<i64: 1, 128>}, {pipeline_mode = #tpu.pipeline_mode<synchronous>, transform_indices = @transform_5, window_bounds = array<i64: 1, 128>}]} {
    %c0 = arith.constant 0 : index
    %c0_0 = arith.constant 0 : index
    %0 = vector.load %arg1[%c0, %c0_0] : memref<4x128xf32, #tpu.memory_space<vmem>>, vector<4x128xf32>
    %1 = tpu.iota {dimensions = array<i32: 0>} : vector<128x128xi32>
    %2 = tpu.iota {dimensions = array<i32: 1>} : vector<128x128xi32>
    %c32_i32 = arith.constant 32 : i32
    %c0_i32 = arith.constant 0 : i32
    %3 = arith.cmpi eq, %c32_i32, %c0_i32 : i32
    %c1_i32 = arith.constant 1 : i32
    %4 = arith.select %3, %c1_i32, %c32_i32 : i32
    %5 = vector.broadcast %4 : i32 to vector<128x128xi32>
    %6 = arith.remsi %1, %5 : vector<128x128xi32>
    %c0_i32_1 = arith.constant 0 : i32
    %7 = vector.broadcast %c0_i32_1 : i32 to vector<128x128xi32>
    %8 = arith.cmpi ne, %6, %7 : vector<128x128xi32>
    %c0_i32_2 = arith.constant 0 : i32
    %9 = vector.broadcast %c0_i32_2 : i32 to vector<128x128xi32>
    %10 = arith.cmpi slt, %6, %9 : vector<128x128xi32>
    %c0_i32_3 = arith.constant 0 : i32
    %11 = arith.cmpi slt, %4, %c0_i32_3 : i32
    %12 = vector.broadcast %11 : i1 to vector<128x128xi1>
    %13 = vector.broadcast %12 : vector<128x128xi1> to vector<128x128xi1>
    %14 = arith.xori %10, %13 : vector<128x128xi1>
    %15 = arith.andi %14, %8 : vector<128x128xi1>
    %16 = vector.broadcast %4 : i32 to vector<128x128xi32>
    %17 = arith.addi %6, %16 : vector<128x128xi32>
    %18 = arith.select %15, %17, %6 : vector<128x128xi1>, vector<128x128xi32>
    %c32_i32_4 = arith.constant 32 : i32
    %c0_i32_5 = arith.constant 0 : i32
    %19 = arith.cmpi eq, %c32_i32_4, %c0_i32_5 : i32
    %c1_i32_6 = arith.constant 1 : i32
    %20 = arith.select %19, %c1_i32_6, %c32_i32_4 : i32
    %21 = vector.broadcast %20 : i32 to vector<128x128xi32>
    %22 = arith.remsi %2, %21 : vector<128x128xi32>
    %c0_i32_7 = arith.constant 0 : i32
    %23 = vector.broadcast %c0_i32_7 : i32 to vector<128x128xi32>
    %24 = arith.cmpi ne, %22, %23 : vector<128x128xi32>
    %c0_i32_8 = arith.constant 0 : i32
    %25 = vector.broadcast %c0_i32_8 : i32 to vector<128x128xi32>
    %26 = arith.cmpi slt, %22, %25 : vector<128x128xi32>
    %c0_i32_9 = arith.constant 0 : i32
    %27 = arith.cmpi slt, %20, %c0_i32_9 : i32
    %28 = vector.broadcast %27 : i1 to vector<128x128xi1>
    %29 = vector.broadcast %28 : vector<128x128xi1> to vector<128x128xi1>
    %30 = arith.xori %26, %29 : vector<128x128xi1>
    %31 = arith.andi %30, %24 : vector<128x128xi1>
    %32 = vector.broadcast %20 : i32 to vector<128x128xi32>
    %33 = arith.addi %22, %32 : vector<128x128xi32>
    %34 = arith.select %31, %33, %22 : vector<128x128xi1>, vector<128x128xi32>
    %35 = arith.cmpi eq, %18, %34 : vector<128x128xi32>
    %36 = arith.extui %35 : vector<128x128xi1> to vector<128x128xi32>
    %37 = arith.sitofp %36 : vector<128x128xi32> to vector<128x128xf32>
    %cst = arith.constant dense<0.000000e+00> : vector<128xf32>
    %38 = vector.multi_reduction <add>, %0, %cst [0] : vector<4x128xf32> to vector<128xf32>
    %39 = vector.shape_cast %38 : vector<128xf32> to vector<1x128xf32>
    %40 = vector.shape_cast %39 : vector<1x128xf32> to vector<1x128xf32>
    %41 = vector.broadcast %40 : vector<1x128xf32> to vector<8x128xf32>
    %cst_10 = arith.constant dense<0.000000e+00> : vector<8x128xf32>
    %42 = tpu.matmul %41, %37, %cst_10 {dimension_numbers = #tpu.dot_dimension_numbers<[1], [0], [0], [1], [0, 0, 1, 1], [], []>} : vector<8x128xf32>, vector<128x128xf32>, vector<8x128xf32> -> vector<8x128xf32>
    %43 = vector.extract_strided_slice %42 {offsets = [0, 0], sizes = [1, 128], strides = [1, 1]} : vector<8x128xf32> to vector<1x128xf32>
    %cst_11 = arith.constant 6.250000e-02 : f32
    %44 = vector.broadcast %cst_11 : f32 to vector<1x128xf32>
    %45 = arith.mulf %43, %44 : vector<1x128xf32>
    %46 = vector.broadcast %45 : vector<1x128xf32> to vector<4x128xf32>
    %47 = arith.subf %0, %46 : vector<4x128xf32>
    %48 = arith.mulf %47, %47 : vector<4x128xf32>
    %cst_12 = arith.constant dense<0.000000e+00> : vector<128xf32>
    %49 = vector.multi_reduction <add>, %48, %cst_12 [0] : vector<4x128xf32> to vector<128xf32>
    %50 = vector.shape_cast %49 : vector<128xf32> to vector<1x128xf32>
    %51 = vector.shape_cast %50 : vector<1x128xf32> to vector<1x128xf32>
    %52 = vector.broadcast %51 : vector<1x128xf32> to vector<8x128xf32>
    %cst_13 = arith.constant dense<0.000000e+00> : vector<8x128xf32>
    %53 = tpu.matmul %52, %37, %cst_13 {dimension_numbers = #tpu.dot_dimension_numbers<[1], [0], [0], [1], [0, 0, 1, 1], [], []>} : vector<8x128xf32>, vector<128x128xf32>, vector<8x128xf32> -> vector<8x128xf32>
    %54 = vector.extract_strided_slice %53 {offsets = [0, 0], sizes = [1, 128], strides = [1, 1]} : vector<8x128xf32> to vector<1x128xf32>
    %cst_14 = arith.constant 0.0666666701 : f32
    %55 = vector.broadcast %cst_14 : f32 to vector<1x128xf32>
    %56 = arith.mulf %54, %55 : vector<1x128xf32>
    %cst_15 = arith.constant 9.99999974E-6 : f32
    %57 = vector.broadcast %cst_15 : f32 to vector<1x128xf32>
    %58 = arith.addf %56, %57 : vector<1x128xf32>
    %59 = math.rsqrt %58 : vector<1x128xf32>
    %c0_16 = arith.constant 0 : index
    %c0_17 = arith.constant 0 : index
    %60 = vector.load %arg2[%c0_16, %c0_17] : memref<1x128xf32, #tpu.memory_space<vmem>>, vector<1x128xf32>
    %61 = math.exp %60 : vector<1x128xf32>
    %62 = arith.mulf %61, %59 : vector<1x128xf32>
    %c0_18 = arith.constant 0 : index
    %c0_19 = arith.constant 0 : index
    %63 = vector.load %arg3[%c0_18, %c0_19] : memref<1x128xf32, #tpu.memory_space<vmem>>, vector<1x128xf32>
    %64 = arith.mulf %45, %62 : vector<1x128xf32>
    %65 = arith.subf %63, %64 : vector<1x128xf32>
    %66 = vector.broadcast %62 : vector<1x128xf32> to vector<4x128xf32>
    %67 = arith.mulf %0, %66 : vector<4x128xf32>
    %68 = vector.broadcast %65 : vector<1x128xf32> to vector<4x128xf32>
    %69 = arith.addf %67, %68 : vector<4x128xf32>
    %c0_20 = arith.constant 0 : index
    %c0_21 = arith.constant 0 : index
    %70 = vector.load %arg4[%c0_20, %c0_21] : memref<4x128xf32, #tpu.memory_space<vmem>>, vector<4x128xf32>
    tpu.vector_store %arg4[%c0_20, %c0_21], %69 {strides = array<i32>} : memref<4x128xf32, #tpu.memory_space<vmem>>, vector<4x128xf32>,
    %c0_22 = arith.constant 0 : index
    %c0_23 = arith.constant 0 : index
    %71 = vector.load %arg5[%c0_22, %c0_23] : memref<1x128xf32, #tpu.memory_space<vmem>>, vector<1x128xf32>
    tpu.vector_store %arg5[%c0_22, %c0_23], %45 {strides = array<i32>} : memref<1x128xf32, #tpu.memory_space<vmem>>, vector<1x128xf32>,
    %c0_24 = arith.constant 0 : index
    %c0_25 = arith.constant 0 : index
    %72 = vector.load %arg6[%c0_24, %c0_25] : memref<1x128xf32, #tpu.memory_space<vmem>>, vector<1x128xf32>
    tpu.vector_store %arg6[%c0_24, %c0_25], %56 {strides = array<i32>} : memref<1x128xf32, #tpu.memory_space<vmem>>, vector<1x128xf32>,
    return
  }
  func.func @transform_0(%arg0: i32) -> (i32, i32) {
    %c0_i32 = arith.constant 0 : i32
    %c0_i32_0 = arith.constant 0 : i32
    %c0_i32_1 = arith.constant 0 : i32
    return %c0_i32, %c0_i32_0 : i32, i32
  }
  func.func @transform_1(%arg0: i32) -> (i32, i32) {
    %c0_i32 = arith.constant 0 : i32
    %c0_i32_0 = arith.constant 0 : i32
    %c0_i32_1 = arith.constant 0 : i32
    return %c0_i32, %c0_i32_0 : i32, i32
  }
  func.func @transform_2(%arg0: i32) -> (i32, i32) {
    %c0_i32 = arith.constant 0 : i32
    %c0_i32_0 = arith.constant 0 : i32
    %c0_i32_1 = arith.constant 0 : i32
    return %c0_i32, %c0_i32_0 : i32, i32
  }
  func.func @transform_3(%arg0: i32) -> (i32, i32) {
    %c0_i32 = arith.constant 0 : i32
    %c0_i32_0 = arith.constant 0 : i32
    %c0_i32_1 = arith.constant 0 : i32
    return %c0_i32, %c0_i32_0 : i32, i32
  }
  func.func @transform_4(%arg0: i32) -> (i32, i32) {
    %c0_i32 = arith.constant 0 : i32
    %c0_i32_0 = arith.constant 0 : i32
    %c0_i32_1 = arith.constant 0 : i32
    return %c0_i32, %c0_i32_0 : i32, i32
  }
  func.func @transform_5(%arg0: i32) -> (i32, i32) {
    %c0_i32 = arith.constant 0 : i32
    %c0_i32_0 = arith.constant 0 : i32
    %c0_i32_1 = arith.constant 0 : i32
    return %c0_i32, %c0_i32_0 : i32, i32
  }
}

</mosaic_0001>

<llo_original>
// kernel: tile.13
$region0: #{tile.13}
  #allocation0 [shape = 's32[1]{0}', space=sflag, size = 0x4, scoped, tag = 'scoped memory for tile.13']
  %s0 = inlined_call_operand.vmem [shape: f32[32], index: 0, kind: input, shape index: {}]
  %s1 = inlined_call_operand.vmem [shape: f32[4,32], index: 1, kind: output, shape index: {}]
  // Predicated region
  $region2: #{tile.13} parent=0 // pred_check
    _
  $region3: #{tile.13} parent=0 // pred_check_branch
    %3 = sbr.rel (0) target = $region5
  $region4: #{tile.13} parent=0 // pred_region
    _
  $region5: #{tile.13} parent=0 // pred_fallthru
    _
  %v4 = vld [vmem:[%s0] ss:$0 sm:$0xff]
  %5 = vst [vmem:[%s1] sm:$0xf] %v4

// kernel: tile.14
$region0: #{tile.14}
  %s0 = inlined_call_operand.vmem [shape: f32[4,32], index: 0, kind: input, shape index: {}]
  %s1 = inlined_call_operand.vmem [shape: f32[1,128], index: 1, kind: output, shape index: {}]
  $region1: #{tile.14} parent=0
    #allocation0 [shape = 'u8[4096]{0}', space=vmem, size = 0x1000, scoped, tag = 'scoped mem for output reshape']
    #allocation1 [shape = 'u8[4096]{0}', space=vmem, size = 0x1000, scoped, tag = 'scoped mem for input reshape']
    %s3 = sshllo.u32 0, 4
    %v4 = vld [vmem:[%s0] sm:%s3]
    %5 = vst [vmem:[#allocation1] sm:%s3] %v4
    %v6 = vld [vmem:[#allocation1] sm:$0x1]
    %vm7 = vcmask 261120
    %8 = vst.msk [vmem:[#allocation0] sm:$0x1] %vm7, %v6
    %s9 = scalar_lea.vmem [#allocation1], 3
    %v10 = vld [vmem:[%s9] sm:$0x1]
    %11 = vrot.lane.b32.xlu0 %v10, 96
    %v12 = vpop.permute.xlu0 %11
    %vm13 = vcmask 1048320
    %14 = vst.msk [vmem:[#allocation0] sm:$0x1] %vm13, %v12
    %s15 = scalar_lea.vmem [#allocation1], 2
    %v16 = vld [vmem:[%s15] sm:$0x1]
    %17 = vrot.lane.b32.xlu0 %v16, 64
    %v18 = vpop.permute.xlu0 %17
    %vm19 = vcmask 785920
    %20 = vst.msk [vmem:[#allocation0] sm:$0x1] %vm19, %v18
    %s21 = scalar_lea.vmem [#allocation1], 1
    %v22 = vld [vmem:[%s21] sm:$0x1]
    %23 = vrot.lane.b32.xlu0 %v22, 32
    %v24 = vpop.permute.xlu0 %23
    %vm25 = vcmask 523520
    %26 = vst.msk [vmem:[#allocation0] sm:$0x1] %vm25, %v24
    %s28 = sshllo.u32 0, 1
    %v30 = vld [vmem:[#allocation0] sm:%s28]
    %s31 = sshllo.u32 0, 1
    %32 = vst [vmem:[%s1] sm:%s31] %v30

// kernel: batchnorm_forward.1
$region0: #{batchnorm_forward.1}
  #allocation0 [shape = 'u32[]', space=smem, size = 0x4, offset = 0x4, fixed_abs, tag = 'smem constant byte address 0x4 - core index']
  #allocation1 [shape = 'u32[144,128]{1,0:T(1,128)}', space=vmem, size = 0x12000, scoped, tag = 'internal scratch']
  %s0 = inlined_call_operand.vmem [shape: f32[4,128], index: 0, kind: input, shape index: {}]
  %s1 = inlined_call_operand.vmem [shape: f32[1,128], index: 1, kind: input, shape index: {}]
  %s2 = inlined_call_operand.vmem [shape: f32[1,128], index: 2, kind: input, shape index: {}]
  %s3 = inlined_call_operand.vmem [shape: f32[4,128], index: 3, kind: output, shape index: {0}]
  %s4 = inlined_call_operand.vmem [shape: f32[1,128], index: 4, kind: output, shape index: {1}]
  %s5 = inlined_call_operand.vmem [shape: f32[1,128], index: 5, kind: output, shape index: {2}]
  %6 = xla_tuple %s3, %s4, %s5
  %s7 = sld [smem:[#allocation0]]
  $region38: #{batchnorm_forward.1} parent=0
    _
  %s9 = ssub.s32 1, %s7
  %s10 = scalar_select 0, %s9, %s7
  // Predicated region
  $region2: #{batchnorm_forward.1} parent=0 // pred_check
    _
  $region3: #{batchnorm_forward.1} parent=0 // pred_check_branch
    %12 = sbr.rel (0) target = $region5
  $region4: #{batchnorm_forward.1} parent=0 // pred_region
    _
  $region5: #{batchnorm_forward.1} parent=0 // pred_fallthru
    _
  // Predicated region
  $region6: #{batchnorm_forward.1} parent=0 // pred_check
    _
  $region7: #{batchnorm_forward.1} parent=0 // pred_check_branch
    %14 = sbr.rel (0) target = $region9
  $region8: #{batchnorm_forward.1} parent=0 // pred_region
    _
  $region9: #{batchnorm_forward.1} parent=0 // pred_fallthru
    _
  // Predicated region
  $region10: #{batchnorm_forward.1} parent=0 // pred_check
    _
  $region11: #{batchnorm_forward.1} parent=0 // pred_check_branch
    %16 = sbr.rel (0) target = $region13
  $region12: #{batchnorm_forward.1} parent=0 // pred_region
    _
  $region13: #{batchnorm_forward.1} parent=0 // pred_fallthru
    _
  %v17 = vld [vmem:[%s0] sm:$0xf]
  %v18 = vlaneseq
  %v19 = vshrl.u32 %v18, 7
  %v20 = vadd.s32 %v19, 8
  %v21 = vadd.s32 %v19, 16
  %v22 = vadd.s32 %v19, 24
  %v23 = vadd.s32 %v19, 32
  %v24 = vadd.s32 %v19, 40
  %v25 = vadd.s32 %v19, 48
  %v26 = vadd.s32 %v19, 56
  %v27 = vadd.s32 %v19, 64
  %v28 = vadd.s32 %v19, 72
  %v29 = vadd.s32 %v19, 80
  %v30 = vadd.s32 %v19, 88
  %v31 = vadd.s32 %v19, 96
  %v32 = vadd.s32 %v19, 104
  %v33 = vadd.s32 %v19, 112
  %v34 = vadd.s32 %v19, 120
  %v35 = vlaneseq
  %v36 = vand.u32 %v35, 127
  %vm37 = vcmp.lt.s32.totalorder %v19, 0
  %v38 = vsub.s32 0, %v19
  %v39 = vsel %vm37, %v38, %v19
  %v40 = vshrl.u32 %v39, 5
  %v41 = vand.u32 %v39, 31
  %v42 = vsub.s32 0, %v41
  %v43 = vsel %vm37, %v42, %v41
  %vm44 = vcmp.lt.s32.totalorder %v20, 0
  %v45 = vsub.s32 0, %v20
  %v46 = vsel %vm44, %v45, %v20
  %v47 = vshrl.u32 %v46, 5
  %v48 = vand.u32 %v46, 31
  %v49 = vsub.s32 0, %v48
  %v50 = vsel %vm44, %v49, %v48
  %vm51 = vcmp.lt.s32.totalorder %v21, 0
  %v52 = vsub.s32 0, %v21
  %v53 = vsel %vm51, %v52, %v21
  %v54 = vshrl.u32 %v53, 5
  %v55 = vand.u32 %v53, 31
  %v56 = vsub.s32 0, %v55
  %v57 = vsel %vm51, %v56, %v55
  %vm58 = vcmp.lt.s32.totalorder %v22, 0
  %v59 = vsub.s32 0, %v22
  %v60 = vsel %vm58, %v59, %v22
  %v61 = vshrl.u32 %v60, 5
  %v62 = vand.u32 %v60, 31
  %v63 = vsub.s32 0, %v62
  %v64 = vsel %vm58, %v63, %v62
  %vm65 = vcmp.lt.s32.totalorder %v23, 0
  %v66 = vsub.s32 0, %v23
  %v67 = vsel %vm65, %v66, %v23
  %v68 = vshrl.u32 %v67, 5
  %v69 = vand.u32 %v67, 31
  %v70 = vsub.s32 0, %v69
  %v71 = vsel %vm65, %v70, %v69
  %vm72 = vcmp.lt.s32.totalorder %v24, 0
  %v73 = vsub.s32 0, %v24
  %v74 = vsel %vm72, %v73, %v24
  %v75 = vshrl.u32 %v74, 5
  %v76 = vand.u32 %v74, 31
  %v77 = vsub.s32 0, %v76
  %v78 = vsel %vm72, %v77, %v76
  %vm79 = vcmp.lt.s32.totalorder %v25, 0
  %v80 = vsub.s32 0, %v25
  %v81 = vsel %vm79, %v80, %v25
  %v82 = vshrl.u32 %v81, 5
  %v83 = vand.u32 %v81, 31
  %v84 = vsub.s32 0, %v83
  %v85 = vsel %vm79, %v84, %v83
  %vm86 = vcmp.lt.s32.totalorder %v26, 0
  %v87 = vsub.s32 0, %v26
  %v88 = vsel %vm86, %v87, %v26
  %v89 = vshrl.u32 %v88, 5
  %v90 = vand.u32 %v88, 31
  %v91 = vsub.s32 0, %v90
  %v92 = vsel %vm86, %v91, %v90
  %vm93 = vcmp.lt.s32.totalorder %v27, 0
  %v94 = vsub.s32 0, %v27
  %v95 = vsel %vm93, %v94, %v27
  %v96 = vshrl.u32 %v95, 5
  %v97 = vand.u32 %v95, 31
  %v98 = vsub.s32 0, %v97
  %v99 = vsel %vm93, %v98, %v97
  %vm100 = vcmp.lt.s32.totalorder %v28, 0
  %v101 = vsub.s32 0, %v28
  %v102 = vsel %vm100, %v101, %v28
  %v103 = vshrl.u32 %v102, 5
  %v104 = vand.u32 %v102, 31
  %v105 = vsub.s32 0, %v104
  %v106 = vsel %vm100, %v105, %v104
  %vm107 = vcmp.lt.s32.totalorder %v29, 0
  %v108 = vsub.s32 0, %v29
  %v109 = vsel %vm107, %v108, %v29
  %v110 = vshrl.u32 %v109, 5
  %v111 = vand.u32 %v109, 31
  %v112 = vsub.s32 0, %v111
  %v113 = vsel %vm107, %v112, %v111
  %vm114 = vcmp.lt.s32.totalorder %v30, 0
  %v115 = vsub.s32 0, %v30
  %v116 = vsel %vm114, %v115, %v30
  %v117 = vshrl.u32 %v116, 5
  %v118 = vand.u32 %v116, 31
  %v119 = vsub.s32 0, %v118
  %v120 = vsel %vm114, %v119, %v118
  %vm121 = vcmp.lt.s32.totalorder %v31, 0
  %v122 = vsub.s32 0, %v31
  %v123 = vsel %vm121, %v122, %v31
  %v124 = vshrl.u32 %v123, 5
  %v125 = vand.u32 %v123, 31
  %v126 = vsub.s32 0, %v125
  %v127 = vsel %vm121, %v126, %v125
  %vm128 = vcmp.lt.s32.totalorder %v32, 0
  %v129 = vsub.s32 0, %v32
  %v130 = vsel %vm128, %v129, %v32
  %v131 = vshrl.u32 %v130, 5
  %v132 = vand.u32 %v130, 31
  %v133 = vsub.s32 0, %v132
  %v134 = vsel %vm128, %v133, %v132
  %vm135 = vcmp.lt.s32.totalorder %v33, 0
  %v136 = vsub.s32 0, %v33
  %v137 = vsel %vm135, %v136, %v33
  %v138 = vshrl.u32 %v137, 5
  %v139 = vand.u32 %v137, 31
  %v140 = vsub.s32 0, %v139
  %v141 = vsel %vm135, %v140, %v139
  %vm142 = vcmp.lt.s32.totalorder %v34, 0
  %v143 = vsub.s32 0, %v34
  %v144 = vsel %vm142, %v143, %v34
  %v145 = vshrl.u32 %v144, 5
  %v146 = vand.u32 %v144, 31
  %v147 = vsub.s32 0, %v146
  %v148 = vsel %vm142, %v147, %v146
  %vm149 = vcmp.ne.s32.totalorder %v43, 0
  %vm150 = vcmp.ne.s32.totalorder %v50, 0
  %vm151 = vcmp.ne.s32.totalorder %v57, 0
  %vm152 = vcmp.ne.s32.totalorder %v64, 0
  %vm153 = vcmp.ne.s32.totalorder %v71, 0
  %vm154 = vcmp.ne.s32.totalorder %v78, 0
  %vm155 = vcmp.ne.s32.totalorder %v85, 0
  %vm156 = vcmp.ne.s32.totalorder %v92, 0
  %vm157 = vcmp.ne.s32.totalorder %v99, 0
  %vm158 = vcmp.ne.s32.totalorder %v106, 0
  %vm159 = vcmp.ne.s32.totalorder %v113, 0
  %vm160 = vcmp.ne.s32.totalorder %v120, 0
  %vm161 = vcmp.ne.s32.totalorder %v127, 0
  %vm162 = vcmp.ne.s32.totalorder %v134, 0
  %vm163 = vcmp.ne.s32.totalorder %v141, 0
  %vm164 = vcmp.ne.s32.totalorder %v148, 0
  %vm165 = vcmp.lt.s32.totalorder %v43, 0
  %vm166 = vcmp.lt.s32.totalorder %v50, 0
  %vm167 = vcmp.lt.s32.totalorder %v57, 0
  %vm168 = vcmp.lt.s32.totalorder %v64, 0
  %vm169 = vcmp.lt.s32.totalorder %v71, 0
  %vm170 = vcmp.lt.s32.totalorder %v78, 0
  %vm171 = vcmp.lt.s32.totalorder %v85, 0
  %vm172 = vcmp.lt.s32.totalorder %v92, 0
  %vm173 = vcmp.lt.s32.totalorder %v99, 0
  %vm174 = vcmp.lt.s32.totalorder %v106, 0
  %vm175 = vcmp.lt.s32.totalorder %v113, 0
  %vm176 = vcmp.lt.s32.totalorder %v120, 0
  %vm177 = vcmp.lt.s32.totalorder %v127, 0
  %vm178 = vcmp.lt.s32.totalorder %v134, 0
  %vm179 = vcmp.lt.s32.totalorder %v141, 0
  %vm180 = vcmp.lt.s32.totalorder %v148, 0
  %vm181 = vmand %vm165, %vm149
  %vm182 = vmand %vm166, %vm150
  %vm183 = vmand %vm167, %vm151
  %vm184 = vmand %vm168, %vm152
  %vm185 = vmand %vm169, %vm153
  %vm186 = vmand %vm170, %vm154
  %vm187 = vmand %vm171, %vm155
  %vm188 = vmand %vm172, %vm156
  %vm189 = vmand %vm173, %vm157
  %vm190 = vmand %vm174, %vm158
  %vm191 = vmand %vm175, %vm159
  %vm192 = vmand %vm176, %vm160
  %vm193 = vmand %vm177, %vm161
  %vm194 = vmand %vm178, %vm162
  %vm195 = vmand %vm179, %vm163
  %vm196 = vmand %vm180, %vm164
  %v197 = vadd.s32 %v43, 32
  %v198 = vadd.s32 %v50, 32
  %v199 = vadd.s32 %v57, 32
  %v200 = vadd.s32 %v64, 32
  %v201 = vadd.s32 %v71, 32
  %v202 = vadd.s32 %v78, 32
  %v203 = vadd.s32 %v85, 32
  %v204 = vadd.s32 %v92, 32
  %v205 = vadd.s32 %v99, 32
  %v206 = vadd.s32 %v106, 32
  %v207 = vadd.s32 %v113, 32
  %v208 = vadd.s32 %v120, 32
  %v209 = vadd.s32 %v127, 32
  %v210 = vadd.s32 %v134, 32
  %v211 = vadd.s32 %v141, 32
  %v212 = vadd.s32 %v148, 32
  %v213 = vsel %vm181, %v197, %v43
  %v214 = vsel %vm182, %v198, %v50
  %v215 = vsel %vm183, %v199, %v57
  %v216 = vsel %vm184, %v200, %v64
  %v217 = vsel %vm185, %v201, %v71
  %v218 = vsel %vm186, %v202, %v78
  %v219 = vsel %vm187, %v203, %v85
  %v220 = vsel %vm188, %v204, %v92
  %v221 = vsel %vm189, %v205, %v99
  %v222 = vsel %vm190, %v206, %v106
  %v223 = vsel %vm191, %v207, %v113
  %v224 = vsel %vm192, %v208, %v120
  %v225 = vsel %vm193, %v209, %v127
  %v226 = vsel %vm194, %v210, %v134
  %v227 = vsel %vm195, %v211, %v141
  %v228 = vsel %vm196, %v212, %v148
  %vm229 = vcmp.lt.s32.totalorder %v36, 0
  %v230 = vsub.s32 0, %v36
  %v231 = vsel %vm229, %v230, %v36
  %v232 = vshrl.u32 %v231, 5
  %v233 = vand.u32 %v231, 31
  %v234 = vsub.s32 0, %v233
  %v235 = vsel %vm229, %v234, %v233
  %vm236 = vcmp.ne.s32.totalorder %v235, 0
  %vm237 = vcmp.lt.s32.totalorder %v235, 0
  %vm238 = vmand %vm237, %vm236
  %v239 = vadd.s32 %v235, 32
  %v240 = vsel %vm238, %v239, %v235
  %vm241 = vcmp.eq.s32.totalorder %v213, %v240
  %vm242 = vcmp.eq.s32.totalorder %v214, %v240
  %vm243 = vcmp.eq.s32.totalorder %v215, %v240
  %vm244 = vcmp.eq.s32.totalorder %v216, %v240
  %vm245 = vcmp.eq.s32.totalorder %v217, %v240
  %vm246 = vcmp.eq.s32.totalorder %v218, %v240
  %vm247 = vcmp.eq.s32.totalorder %v219, %v240
  %vm248 = vcmp.eq.s32.totalorder %v220, %v240
  %vm249 = vcmp.eq.s32.totalorder %v221, %v240
  %vm250 = vcmp.eq.s32.totalorder %v222, %v240
  %vm251 = vcmp.eq.s32.totalorder %v223, %v240
  %vm252 = vcmp.eq.s32.totalorder %v224, %v240
  %vm253 = vcmp.eq.s32.totalorder %v225, %v240
  %vm254 = vcmp.eq.s32.totalorder %v226, %v240
  %vm255 = vcmp.eq.s32.totalorder %v227, %v240
  %vm256 = vcmp.eq.s32.totalorder %v228, %v240
  %v257 = vsel %vm241, 1, 0
  %v258 = vsel %vm242, 1, 0
  %v259 = vsel %vm243, 1, 0
  %v260 = vsel %vm244, 1, 0
  %v261 = vsel %vm245, 1, 0
  %v262 = vsel %vm246, 1, 0
  %v263 = vsel %vm247, 1, 0
  %v264 = vsel %vm248, 1, 0
  %v265 = vsel %vm249, 1, 0
  %v266 = vsel %vm250, 1, 0
  %v267 = vsel %vm251, 1, 0
  %v268 = vsel %vm252, 1, 0
  %v269 = vsel %vm253, 1, 0
  %v270 = vsel %vm254, 1, 0
  %v271 = vsel %vm255, 1, 0
  %v272 = vsel %vm256, 1, 0
  %v273 = vcvt.s32.f32 %v257
  %v274 = vcvt.s32.f32 %v258
  %v275 = vcvt.s32.f32 %v259
  %v276 = vcvt.s32.f32 %v260
  %v277 = vcvt.s32.f32 %v261
  %v278 = vcvt.s32.f32 %v262
  %v279 = vcvt.s32.f32 %v263
  %v280 = vcvt.s32.f32 %v264
  %v281 = vcvt.s32.f32 %v265
  %v282 = vcvt.s32.f32 %v266
  %v283 = vcvt.s32.f32 %v267
  %v284 = vcvt.s32.f32 %v268
  %v285 = vcvt.s32.f32 %v269
  %v286 = vcvt.s32.f32 %v270
  %v287 = vcvt.s32.f32 %v271
  %v288 = vcvt.s32.f32 %v272
  %vm289 = vcmask 1043456
  %v290 = vsel %vm289, %v17, 0.0
  %v291 = vrot.slane %v290, 4
  %v292 = vadd.f32 %v290, %v291
  %v293 = vrot.slane %v292, 2
  %v294 = vadd.f32 %v292, %v293
  %v295 = vrot.slane %v294, 1
  %v296 = vadd.f32 %v294, %v295
  %297 = vmatprep.subr.mxu0 0.0
  %298 = vmatpush1.msra.mxu0 %v273
  %299 = vmatprep.subr.mxu0 0.0
  %300 = vmatpush1.msra.mxu0 %v274
  %301 = vmatprep.subr.mxu0 0.0
  %302 = vmatpush1.msra.mxu0 %v275
  %303 = vmatprep.subr.mxu0 0.0
  %304 = vmatpush1.msra.mxu0 %v276
  %305 = vmatprep.subr.mxu0 0.0
  %306 = vmatpush1.msra.mxu0 %v277
  %307 = vmatprep.subr.mxu0 0.0
  %308 = vmatpush1.msra.mxu0 %v278
  %309 = vmatprep.subr.mxu0 0.0
  %310 = vmatpush1.msra.mxu0 %v279
  %311 = vmatprep.subr.mxu0 0.0
  %312 = vmatpush1.msra.mxu0 %v280
  %313 = vmatprep.subr.mxu0 0.0
  %314 = vmatpush1.msra.mxu0 %v281
  %315 = vmatprep.subr.mxu0 0.0
  %316 = vmatpush1.msra.mxu0 %v282
  %317 = vmatprep.subr.mxu0 0.0
  %318 = vmatpush1.msra.mxu0 %v283
  %319 = vmatprep.subr.mxu0 0.0
  %320 = vmatpush1.msra.mxu0 %v284
  %321 = vmatprep.subr.mxu0 0.0
  %322 = vmatpush1.msra.mxu0 %v285
  %323 = vmatprep.subr.mxu0 0.0
  %324 = vmatpush1.msra.mxu0 %v286
  %325 = vmatprep.subr.mxu0 0.0
  %326 = vmatpush1.msra.mxu0 %v287
  %327 = vmatprep.subr.mxu0 0.0
  %328 = vmatpush1.msra.mxu0 %v288
  %329 = vmatprep.subr.mxu0 0.0
  %330 = vmatpush1.msra.mxu0 0.0
  %331 = vmatprep.subr.mxu0 0.0
  %332 = vmatpush1.msra.mxu0 0.0
  %333 = vmatprep.subr.mxu0 0.0
  %334 = vmatpush1.msra.mxu0 0.0
  %335 = vmatprep.subr.mxu0 0.0
  %336 = vmatpush1.msra.mxu0 0.0
  %337 = vmatprep.subr.mxu0 0.0
  %338 = vmatpush1.msra.mxu0 0.0
  %339 = vmatprep.subr.mxu0 0.0
  %340 = vmatpush1.msra.mxu0 0.0
  %341 = vmatprep.subr.mxu0 0.0
  %342 = vmatpush1.msra.mxu0 0.0
  %343 = vmatprep.subr.mxu0 0.0
  %344 = vmatpush1.msra.mxu0 0.0
  %345 = vmatprep.subr.mxu0 0.0
  %346 = vmatpush1.msra.mxu0 0.0
  %347 = vmatprep.subr.mxu0 0.0
  %348 = vmatpush1.msra.mxu0 0.0
  %349 = vmatprep.subr.mxu0 0.0
  %350 = vmatpush1.msra.mxu0 0.0
  %351 = vmatprep.subr.mxu0 0.0
  %352 = vmatpush1.msra.mxu0 0.0
  %353 = vmatprep.subr.mxu0 0.0
  %354 = vmatpush1.msra.mxu0 0.0
  %355 = vmatprep.subr.mxu0 0.0
  %356 = vmatpush1.msra.mxu0 0.0
  %357 = vmatprep.subr.mxu0 0.0
  %358 = vmatpush1.msra.mxu0 0.0
  %359 = vmatprep.subr.mxu0 0.0
  %360 = vmatpush1.msra.mxu0 0.0
  %361 = vmatprep.mubr.f32.mxu0 0.0
  %362 = vmatmul.mubr.f32.gmra.mrb[0].mxu0 %v296
  %v363 = vpop.f32.mrb[0].mxu0
  %v364 = vadd.f32 0.0, %v363
  %v365 = vpop.f32.mrb[0].mxu0
  %366 = vdwg.mxu0
  %v367 = vmul.f32 %v364, 0.0625
  %v368 = vlaneseq
  %v369 = vshrl.u32 %v368, 7
  %v370 = vsub.s32 0, %v369
  %v371 = vrot.slane %v367, %v370
  %v372 = vsub.f32 %v17, %v371
  %v373 = vmul.f32 %v372, %v372
  %v374 = vsel %vm289, %v373, 0.0
  %v375 = vrot.slane %v374, 4
  %v376 = vadd.f32 %v374, %v375
  %v377 = vrot.slane %v376, 2
  %v378 = vadd.f32 %v376, %v377
  %v379 = vrot.slane %v378, 1
  %v380 = vadd.f32 %v378, %v379
  %381 = vmatprep.subr.mxu0 0.0
  %382 = vmatpush1.msra.mxu0 %v273
  %383 = vmatprep.subr.mxu0 0.0
  %384 = vmatpush1.msra.mxu0 %v274
  %385 = vmatprep.subr.mxu0 0.0
  %386 = vmatpush1.msra.mxu0 %v275
  %387 = vmatprep.subr.mxu0 0.0
  %388 = vmatpush1.msra.mxu0 %v276
  %389 = vmatprep.subr.mxu0 0.0
  %390 = vmatpush1.msra.mxu0 %v277
  %391 = vmatprep.subr.mxu0 0.0
  %392 = vmatpush1.msra.mxu0 %v278
  %393 = vmatprep.subr.mxu0 0.0
  %394 = vmatpush1.msra.mxu0 %v279
  %395 = vmatprep.subr.mxu0 0.0
  %396 = vmatpush1.msra.mxu0 %v280
  %397 = vmatprep.subr.mxu0 0.0
  %398 = vmatpush1.msra.mxu0 %v281
  %399 = vmatprep.subr.mxu0 0.0
  %400 = vmatpush1.msra.mxu0 %v282
  %401 = vmatprep.subr.mxu0 0.0
  %402 = vmatpush1.msra.mxu0 %v283
  %403 = vmatprep.subr.mxu0 0.0
  %404 = vmatpush1.msra.mxu0 %v284
  %405 = vmatprep.subr.mxu0 0.0
  %406 = vmatpush1.msra.mxu0 %v285
  %407 = vmatprep.subr.mxu0 0.0
  %408 = vmatpush1.msra.mxu0 %v286
  %409 = vmatprep.subr.mxu0 0.0
  %410 = vmatpush1.msra.mxu0 %v287
  %411 = vmatprep.subr.mxu0 0.0
  %412 = vmatpush1.msra.mxu0 %v288
  %413 = vmatprep.subr.mxu0 0.0
  %414 = vmatpush1.msra.mxu0 0.0
  %415 = vmatprep.subr.mxu0 0.0
  %416 = vmatpush1.msra.mxu0 0.0
  %417 = vmatprep.subr.mxu0 0.0
  %418 = vmatpush1.msra.mxu0 0.0
  %419 = vmatprep.subr.mxu0 0.0
  %420 = vmatpush1.msra.mxu0 0.0
  %421 = vmatprep.subr.mxu0 0.0
  %422 = vmatpush1.msra.mxu0 0.0
  %423 = vmatprep.subr.mxu0 0.0
  %424 = vmatpush1.msra.mxu0 0.0
  %425 = vmatprep.subr.mxu0 0.0
  %426 = vmatpush1.msra.mxu0 0.0
  %427 = vmatprep.subr.mxu0 0.0
  %428 = vmatpush1.msra.mxu0 0.0
  %429 = vmatprep.subr.mxu0 0.0
  %430 = vmatpush1.msra.mxu0 0.0
  %431 = vmatprep.subr.mxu0 0.0
  %432 = vmatpush1.msra.mxu0 0.0
  %433 = vmatprep.subr.mxu0 0.0
  %434 = vmatpush1.msra.mxu0 0.0
  %435 = vmatprep.subr.mxu0 0.0
  %436 = vmatpush1.msra.mxu0 0.0
  %437 = vmatprep.subr.mxu0 0.0
  %438 = vmatpush1.msra.mxu0 0.0
  %439 = vmatprep.subr.mxu0 0.0
  %440 = vmatpush1.msra.mxu0 0.0
  %441 = vmatprep.subr.mxu0 0.0
  %442 = vmatpush1.msra.mxu0 0.0
  %443 = vmatprep.subr.mxu0 0.0
  %444 = vmatpush1.msra.mxu0 0.0
  %445 = vmatprep.mubr.f32.mxu0 0.0
  %446 = vmatmul.mubr.f32.gmra.mrb[0].mxu0 %v380
  %v447 = vpop.f32.mrb[0].mxu0
  %v448 = vadd.f32 0.0, %v447
  %v449 = vpop.f32.mrb[0].mxu0
  %450 = vdwg.mxu0
  %v451 = vmul.f32 %v448, 0.06666667
  %v452 = vadd.f32 %v451, 1e-05
  %v453 = vrsqrt.pop %v452
  %v454 = vld [vmem:[%s1] sm:$0x1]
  %v455 = vmul.f32 %v454, 1.442695
  %v456 = vpow.pop %v455
  %v457 = vmul.f32 %v456, %v453
  %v458 = vld [vmem:[%s2] sm:$0x1]
  %v459 = vmul.f32 %v367, %v457
  %v460 = vsub.f32 %v458, %v459
  %v462 = vlaneseq
  %v463 = vshrl.u32 %v462, 7
  %v464 = vsub.s32 0, %v463
  %v465 = vrot.slane %v457, %v464
  %v467 = vmul.f32 %v17, %v465
  %v469 = vlaneseq
  %v470 = vshrl.u32 %v469, 7
  %v471 = vsub.s32 0, %v470
  %v472 = vrot.slane %v460, %v471
  %v474 = vadd.f32 %v467, %v472
  %475 = vst [vmem:[%s3] sm:$0xf] %v474
  %476 = vst [vmem:[%s4] sm:$0x1] %v367
  %477 = vst [vmem:[%s5] sm:$0x1] %v451
  // Predicated region
  $region14: #{batchnorm_forward.1} parent=0 // pred_check
    _
  $region15: #{batchnorm_forward.1} parent=0 // pred_check_branch
    %479 = sbr.rel (0) target = $region17
  $region16: #{batchnorm_forward.1} parent=0 // pred_region
    _
  $region17: #{batchnorm_forward.1} parent=0 // pred_fallthru
    _
  // Predicated region
  $region18: #{batchnorm_forward.1} parent=0 // pred_check
    _
  $region19: #{batchnorm_forward.1} parent=0 // pred_check_branch
    %481 = sbr.rel (0) target = $region21
  $region20: #{batchnorm_forward.1} parent=0 // pred_region
    _
  $region21: #{batchnorm_forward.1} parent=0 // pred_fallthru
    _
  // Predicated region
  $region22: #{batchnorm_forward.1} parent=0 // pred_check
    _
  $region23: #{batchnorm_forward.1} parent=0 // pred_check_branch
    %483 = sbr.rel (0) target = $region25
  $region24: #{batchnorm_forward.1} parent=0 // pred_region
    _
  $region25: #{batchnorm_forward.1} parent=0 // pred_fallthru
    _
  // Predicated region
  $region26: #{batchnorm_forward.1} parent=0 // pred_check
    _
  $region27: #{batchnorm_forward.1} parent=0 // pred_check_branch
    %485 = sbr.rel (0) target = $region29
  $region28: #{batchnorm_forward.1} parent=0 // pred_region
    _
  $region29: #{batchnorm_forward.1} parent=0 // pred_fallthru
    _
  // Predicated region
  $region30: #{batchnorm_forward.1} parent=0 // pred_check
    _
  $region31: #{batchnorm_forward.1} parent=0 // pred_check_branch
    %487 = sbr.rel (0) target = $region33
  $region32: #{batchnorm_forward.1} parent=0 // pred_region
    _
  $region33: #{batchnorm_forward.1} parent=0 // pred_fallthru
    _
  // Predicated region
  $region34: #{batchnorm_forward.1} parent=0 // pred_check
    _
  $region35: #{batchnorm_forward.1} parent=0 // pred_check_branch
    %489 = sbr.rel (0) target = $region37
  $region36: #{batchnorm_forward.1} parent=0 // pred_region
    _
  $region37: #{batchnorm_forward.1} parent=0 // pred_fallthru
    _

</llo_original>
